<compile_context>
chip_gen: v7x
topology: tpu7x:2x2x1
jax: 0.10.0
libtpu: 0.0.40
codegen_flags: <defaults>
</compile_context>

<pallas_src>
import jax
import jax.numpy as jnp
from jax.experimental import pallas as pl
from jax.experimental.pallas import tpu as pltpu


def generator_kernel(z_ref,
                     w1_ref, b1_ref,
                     w2_ref, b2_ref,
                     w3_ref, b3_ref,
                     w4_ref, b4_ref,
                     out_ref):
    """Whole MLP for one batch tile: 4 MXU matmuls (bf16 operands, f32
    accumulate) + f32 VPU leaky-relu + f32 EUP tanh."""
    mm_dtype = w1_ref.dtype  # bf16 (or f32 if caller disabled the cast)

    def leaky_relu(x):
        return jnp.where(x > 0, x, 0.2 * x)

    x = z_ref[...]  # already in mm_dtype
    h = jnp.dot(x, w1_ref[...],
                preferred_element_type=jnp.float32) + b1_ref[...]
    h = leaky_relu(h)
    h = jnp.dot(h.astype(mm_dtype), w2_ref[...],
                preferred_element_type=jnp.float32) + b2_ref[...]
    h = leaky_relu(h)
    h = jnp.dot(h.astype(mm_dtype), w3_ref[...],
                preferred_element_type=jnp.float32) + b3_ref[...]
    h = leaky_relu(h)
    h = jnp.dot(h.astype(mm_dtype), w4_ref[...],
                preferred_element_type=jnp.float32) + b4_ref[...]
    out_ref[...] = jnp.tanh(h)


def _pick_batch_tile(B):
    """Largest batch tile: whole batch when small, <=512 rows otherwise."""
    if B <= 512:
        return B
    tb = 512
    while B % tb != 0:
        tb //= 2
    return tb


def generator_forward(z, params, *, tb=None, compute_dtype=jnp.bfloat16):
    """Run the Generator forward pass.

    Grid tiles the batch dimension only (usually a single step); all weights
    and biases are small and resident in VMEM as full blocks. Matmul operands
    are cast to `compute_dtype` (bf16 by default) with f32 accumulation;
    biases and all elementwise math stay f32.
    """
    (w1, b1), (w2, b2), (w3, b3), (w4, b4) = params
    B, a = z.shape
    bdim, cdim, ddim, e = w1.shape[1], w2.shape[1], w3.shape[1], w4.shape[1]

    if tb is None:
        tb = _pick_batch_tile(B)
    assert B % tb == 0, "batch must be divisible by the batch tile"

    # Cast matmul operands only; biases stay f32.
    zc = z.astype(compute_dtype)
    w1c = w1.astype(compute_dtype)
    w2c = w2.astype(compute_dtype)
    w3c = w3.astype(compute_dtype)
    w4c = w4.astype(compute_dtype)

    def full_spec(arr):
        # Full-array block, same block for every grid step -> stays VMEM
        # resident (no re-DMA across batch tiles).
        return pl.BlockSpec(arr.shape, lambda i: (0, 0))

    flops = 2 * B * (a * bdim + bdim * cdim + cdim * ddim + ddim * e)
    transcendentals = B * e  # final tanh
    bytes_accessed = (
        zc.size * zc.dtype.itemsize
        + sum(w.size * w.dtype.itemsize for w in (w1c, w2c, w3c, w4c))
        + sum(b.size * b.dtype.itemsize for b in (b1, b2, b3, b4))
        + B * e * 4  # f32 output
    )

    return pl.pallas_call(
        generator_kernel,
        out_shape=jax.ShapeDtypeStruct((B, e), jnp.float32),
        grid_spec=pltpu.PrefetchScalarGridSpec(
            num_scalar_prefetch=0,
            grid=(B // tb,),
            in_specs=[
                pl.BlockSpec((tb, a), lambda i: (i, 0)),   # z batch tile
                full_spec(w1c), full_spec(b1),
                full_spec(w2c), full_spec(b2),
                full_spec(w3c), full_spec(b3),
                full_spec(w4c), full_spec(b4),
            ],
            out_specs=pl.BlockSpec((tb, e), lambda i: (i, 0)),
        ),
        compiler_params=pltpu.CompilerParams(
            dimension_semantics=("parallel",)),
        cost_estimate=pl.CostEstimate(
            flops=flops,
            transcendentals=transcendentals,
            bytes_accessed=bytes_accessed),
    )(zc, w1c, b1, w2c, b2, w3c, b3, w4c, b4)


def init_generator_params(key, layers):
    """Deterministic synthetic init (uniform, PyTorch-Linear-like fan-in scale).
    Weights stored as (in, out); biases as (1, out)."""
    a, b, c, d, e = layers
    dims = [(a, b), (b, c), (c, d), (d, e)]
    params = []
    for (fan_in, fan_out) in dims:
        key, kw, kb = jax.random.split(key, 3)
        bound = 1.0 / jnp.sqrt(fan_in)
        w = jax.random.uniform(kw, (fan_in, fan_out), jnp.float32,
                               minval=-bound, maxval=bound)
        bias = jax.random.uniform(kb, (1, fan_out), jnp.float32,
                                  minval=-bound, maxval=bound)
        params.append((w, bias))
    return params


def generator_ref(z, params, compute_dtype=jnp.float32):
    """Pure-JAX reference. With compute_dtype=bf16 it mirrors the kernel's
    matmul-operand cast (f32 accumulation, f32 elementwise)."""
    x = z
    for i, (w, b) in enumerate(params):
        x = jnp.dot(x.astype(compute_dtype), w.astype(compute_dtype),
                    preferred_element_type=jnp.float32) + b
        if i < 3:
            x = jnp.where(x > 0, x, 0.2 * x)
        else:
            x = jnp.tanh(x)
    return x


if __name__ == "__main__":
    # Small shapes implied by the module: Generator(layers=(a,b,c,d,e)), z: (batch, a)
    layers = (32, 64, 128, 64, 32)
    batch = 16

    key = jax.random.PRNGKey(0)
    key, kz = jax.random.split(key)
    z = jax.random.normal(kz, (batch, layers[0]), jnp.float32)

    params = init_generator_params(key, layers)

    out = generator_forward(z, params)           # single grid step at B=16
    out = jax.block_until_ready(out)

    assert out.shape == (batch, layers[-1])

    # 1) Tight check vs a reference with matching bf16 matmul operands.
    ref_bf16 = generator_ref(z, params, compute_dtype=jnp.bfloat16)
    assert jnp.allclose(out, ref_bf16, atol=1e-4, rtol=1e-4), \
        "mismatch vs bf16-matmul JAX reference"

    # 2) Loose check vs the full-f32 reference (bf16 operand rounding only).
    ref_f32 = generator_ref(z, params, compute_dtype=jnp.float32)
    assert jnp.allclose(out, ref_f32, atol=5e-2, rtol=5e-2), \
        "mismatch vs f32 JAX reference"

    print("KERNEL_OK")
</pallas_src>

<mosaic_0001>
module attributes {stable_mosaic.version = 11 : i64} {
  func.func @generator_kernel(%arg0: i32, %arg1: memref<16x32xbf16, #tpu.memory_space<vmem>>, %arg2: memref<32x64xbf16, #tpu.memory_space<vmem>>, %arg3: memref<1x64xf32, #tpu.memory_space<vmem>>, %arg4: memref<64x128xbf16, #tpu.memory_space<vmem>>, %arg5: memref<1x128xf32, #tpu.memory_space<vmem>>, %arg6: memref<128x64xbf16, #tpu.memory_space<vmem>>, %arg7: memref<1x64xf32, #tpu.memory_space<vmem>>, %arg8: memref<64x32xbf16, #tpu.memory_space<vmem>>, %arg9: memref<1x32xf32, #tpu.memory_space<vmem>>, %arg10: memref<16x32xf32, #tpu.memory_space<vmem>>) attributes {dimension_semantics = [#tpu.dimension_semantics<parallel>], iteration_bounds = array<i64: 1>, scalar_prefetch = 0 : i64, scratch_operands = 0 : i64, tpu.core_type = #tpu.core_type<tc>, window_params = [{transform_indices = @transform_0, window_bounds = array<i64: 16, 32>}, {pipeline_mode = #tpu.pipeline_mode<synchronous>, transform_indices = @transform_1, window_bounds = array<i64: 32, 64>}, {pipeline_mode = #tpu.pipeline_mode<synchronous>, transform_indices = @transform_2, window_bounds = array<i64: 1, 64>}, {pipeline_mode = #tpu.pipeline_mode<synchronous>, transform_indices = @transform_3, window_bounds = array<i64: 64, 128>}, {pipeline_mode = #tpu.pipeline_mode<synchronous>, transform_indices = @transform_4, window_bounds = array<i64: 1, 128>}, {pipeline_mode = #tpu.pipeline_mode<synchronous>, transform_indices = @transform_5, window_bounds = array<i64: 128, 64>}, {pipeline_mode = #tpu.pipeline_mode<synchronous>, transform_indices = @transform_6, window_bounds = array<i64: 1, 64>}, {pipeline_mode = #tpu.pipeline_mode<synchronous>, transform_indices = @transform_7, window_bounds = array<i64: 64, 32>}, {pipeline_mode = #tpu.pipeline_mode<synchronous>, transform_indices = @transform_8, window_bounds = array<i64: 1, 32>}, {transform_indices = @transform_9, window_bounds = array<i64: 16, 32>}]} {
    %c0 = arith.constant 0 : index
    %c0_0 = arith.constant 0 : index
    %0 = vector.load %arg1[%c0, %c0_0] : memref<16x32xbf16, #tpu.memory_space<vmem>>, vector<16x32xbf16>
    %c0_1 = arith.constant 0 : index
    %c0_2 = arith.constant 0 : index
    %1 = vector.load %arg2[%c0_1, %c0_2] : memref<32x64xbf16, #tpu.memory_space<vmem>>, vector<32x64xbf16>
    %cst = arith.constant dense<0.000000e+00> : vector<16x64xf32>
    %2 = tpu.matmul %0, %1, %cst {dimension_numbers = #tpu.dot_dimension_numbers<[1], [0], [0], [1], [0, 0, 1, 1], [], []>} : vector<16x32xbf16>, vector<32x64xbf16>, vector<16x64xf32> -> vector<16x64xf32>
    %c0_3 = arith.constant 0 : index
    %c0_4 = arith.constant 0 : index
    %3 = vector.load %arg3[%c0_3, %c0_4] : memref<1x64xf32, #tpu.memory_space<vmem>>, vector<1x64xf32>
    %4 = vector.broadcast %3 : vector<1x64xf32> to vector<16x64xf32>
    %5 = arith.addf %2, %4 : vector<16x64xf32>
    %cst_5 = arith.constant 0.000000e+00 : f32
    %6 = vector.broadcast %cst_5 : f32 to vector<16x64xf32>
    %7 = arith.cmpf ogt, %5, %6 : vector<16x64xf32>
    %cst_6 = arith.constant 2.000000e-01 : f32
    %8 = vector.broadcast %cst_6 : f32 to vector<16x64xf32>
    %9 = arith.mulf %8, %5 : vector<16x64xf32>
    %10 = arith.select %7, %5, %9 : vector<16x64xi1>, vector<16x64xf32>
    %11 = arith.truncf %10 : vector<16x64xf32> to vector<16x64xbf16>
    %c0_7 = arith.constant 0 : index
    %c0_8 = arith.constant 0 : index
    %12 = vector.load %arg4[%c0_7, %c0_8] : memref<64x128xbf16, #tpu.memory_space<vmem>>, vector<64x128xbf16>
    %cst_9 = arith.constant dense<0.000000e+00> : vector<16x128xf32>
    %13 = tpu.matmul %11, %12, %cst_9 {dimension_numbers = #tpu.dot_dimension_numbers<[1], [0], [0], [1], [0, 0, 1, 1], [], []>} : vector<16x64xbf16>, vector<64x128xbf16>, vector<16x128xf32> -> vector<16x128xf32>
    %c0_10 = arith.constant 0 : index
    %c0_11 = arith.constant 0 : index
    %14 = vector.load %arg5[%c0_10, %c0_11] : memref<1x128xf32, #tpu.memory_space<vmem>>, vector<1x128xf32>
    %15 = vector.broadcast %14 : vector<1x128xf32> to vector<16x128xf32>
    %16 = arith.addf %13, %15 : vector<16x128xf32>
    %cst_12 = arith.constant 0.000000e+00 : f32
    %17 = vector.broadcast %cst_12 : f32 to vector<16x128xf32>
    %18 = arith.cmpf ogt, %16, %17 : vector<16x128xf32>
    %cst_13 = arith.constant 2.000000e-01 : f32
    %19 = vector.broadcast %cst_13 : f32 to vector<16x128xf32>
    %20 = arith.mulf %19, %16 : vector<16x128xf32>
    %21 = arith.select %18, %16, %20 : vector<16x128xi1>, vector<16x128xf32>
    %22 = arith.truncf %21 : vector<16x128xf32> to vector<16x128xbf16>
    %c0_14 = arith.constant 0 : index
    %c0_15 = arith.constant 0 : index
    %23 = vector.load %arg6[%c0_14, %c0_15] : memref<128x64xbf16, #tpu.memory_space<vmem>>, vector<128x64xbf16>
    %cst_16 = arith.constant dense<0.000000e+00> : vector<16x64xf32>
    %24 = tpu.matmul %22, %23, %cst_16 {dimension_numbers = #tpu.dot_dimension_numbers<[1], [0], [0], [1], [0, 0, 1, 1], [], []>} : vector<16x128xbf16>, vector<128x64xbf16>, vector<16x64xf32> -> vector<16x64xf32>
    %c0_17 = arith.constant 0 : index
    %c0_18 = arith.constant 0 : index
    %25 = vector.load %arg7[%c0_17, %c0_18] : memref<1x64xf32, #tpu.memory_space<vmem>>, vector<1x64xf32>
    %26 = vector.broadcast %25 : vector<1x64xf32> to vector<16x64xf32>
    %27 = arith.addf %24, %26 : vector<16x64xf32>
    %cst_19 = arith.constant 0.000000e+00 : f32
    %28 = vector.broadcast %cst_19 : f32 to vector<16x64xf32>
    %29 = arith.cmpf ogt, %27, %28 : vector<16x64xf32>
    %cst_20 = arith.constant 2.000000e-01 : f32
    %30 = vector.broadcast %cst_20 : f32 to vector<16x64xf32>
    %31 = arith.mulf %30, %27 : vector<16x64xf32>
    %32 = arith.select %29, %27, %31 : vector<16x64xi1>, vector<16x64xf32>
    %33 = arith.truncf %32 : vector<16x64xf32> to vector<16x64xbf16>
    %c0_21 = arith.constant 0 : index
    %c0_22 = arith.constant 0 : index
    %34 = vector.load %arg8[%c0_21, %c0_22] : memref<64x32xbf16, #tpu.memory_space<vmem>>, vector<64x32xbf16>
    %cst_23 = arith.constant dense<0.000000e+00> : vector<16x32xf32>
    %35 = tpu.matmul %33, %34, %cst_23 {dimension_numbers = #tpu.dot_dimension_numbers<[1], [0], [0], [1], [0, 0, 1, 1], [], []>} : vector<16x64xbf16>, vector<64x32xbf16>, vector<16x32xf32> -> vector<16x32xf32>
    %c0_24 = arith.constant 0 : index
    %c0_25 = arith.constant 0 : index
    %36 = vector.load %arg9[%c0_24, %c0_25] : memref<1x32xf32, #tpu.memory_space<vmem>>, vector<1x32xf32>
    %37 = vector.broadcast %36 : vector<1x32xf32> to vector<16x32xf32>
    %38 = arith.addf %35, %37 : vector<16x32xf32>
    %39 = math.tanh %38 : vector<16x32xf32>
    %c0_26 = arith.constant 0 : index
    %c0_27 = arith.constant 0 : index
    %40 = vector.load %arg10[%c0_26, %c0_27] : memref<16x32xf32, #tpu.memory_space<vmem>>, vector<16x32xf32>
    tpu.vector_store %arg10[%c0_26, %c0_27], %39 {strides = array<i32>} : memref<16x32xf32, #tpu.memory_space<vmem>>, vector<16x32xf32>,
    return
  }
  func.func @transform_0(%arg0: i32) -> (i32, i32) {
    %c0_i32 = arith.constant 0 : i32
    %c0_i32_0 = arith.constant 0 : i32
    return %arg0, %c0_i32 : i32, i32
  }
  func.func @transform_1(%arg0: i32) -> (i32, i32) {
    %c0_i32 = arith.constant 0 : i32
    %c0_i32_0 = arith.constant 0 : i32
    %c0_i32_1 = arith.constant 0 : i32
    return %c0_i32, %c0_i32_0 : i32, i32
  }
  func.func @transform_2(%arg0: i32) -> (i32, i32) {
    %c0_i32 = arith.constant 0 : i32
    %c0_i32_0 = arith.constant 0 : i32
    %c0_i32_1 = arith.constant 0 : i32
    return %c0_i32, %c0_i32_0 : i32, i32
  }
  func.func @transform_3(%arg0: i32) -> (i32, i32) {
    %c0_i32 = arith.constant 0 : i32
    %c0_i32_0 = arith.constant 0 : i32
    %c0_i32_1 = arith.constant 0 : i32
    return %c0_i32, %c0_i32_0 : i32, i32
  }
  func.func @transform_4(%arg0: i32) -> (i32, i32) {
    %c0_i32 = arith.constant 0 : i32
    %c0_i32_0 = arith.constant 0 : i32
    %c0_i32_1 = arith.constant 0 : i32
    return %c0_i32, %c0_i32_0 : i32, i32
  }
  func.func @transform_5(%arg0: i32) -> (i32, i32) {
    %c0_i32 = arith.constant 0 : i32
    %c0_i32_0 = arith.constant 0 : i32
    %c0_i32_1 = arith.constant 0 : i32
    return %c0_i32, %c0_i32_0 : i32, i32
  }
  func.func @transform_6(%arg0: i32) -> (i32, i32) {
    %c0_i32 = arith.constant 0 : i32
    %c0_i32_0 = arith.constant 0 : i32
    %c0_i32_1 = arith.constant 0 : i32
    return %c0_i32, %c0_i32_0 : i32, i32
  }
  func.func @transform_7(%arg0: i32) -> (i32, i32) {
    %c0_i32 = arith.constant 0 : i32
    %c0_i32_0 = arith.constant 0 : i32
    %c0_i32_1 = arith.constant 0 : i32
    return %c0_i32, %c0_i32_0 : i32, i32
  }
  func.func @transform_8(%arg0: i32) -> (i32, i32) {
    %c0_i32 = arith.constant 0 : i32
    %c0_i32_0 = arith.constant 0 : i32
    %c0_i32_1 = arith.constant 0 : i32
    return %c0_i32, %c0_i32_0 : i32, i32
  }
  func.func @transform_9(%arg0: i32) -> (i32, i32) {
    %c0_i32 = arith.constant 0 : i32
    %c0_i32_0 = arith.constant 0 : i32
    return %arg0, %c0_i32 : i32, i32
  }
}

</mosaic_0001>

<llo_original>
// kernel: tpu_custom_call.1
$region0: #{tpu_custom_call.1}
  #allocation0 [shape = 'u32[]', space=smem, size = 0x4, offset = 0x4, fixed_abs, tag = 'smem constant byte address 0x4 - core index']
  #allocation1 [shape = 'u32[144,128]{1,0:T(1,128)}', space=vmem, size = 0x12000, scoped, tag = 'internal scratch']
  %s0 = inlined_call_operand.vmem [shape: bf16[16,32], index: 0, kind: input, shape index: {}]
  %s1 = inlined_call_operand.vmem [shape: bf16[32,64], index: 1, kind: input, shape index: {}]
  %s2 = inlined_call_operand.vmem [shape: f32[1,64], index: 2, kind: input, shape index: {}]
  %s3 = inlined_call_operand.vmem [shape: bf16[64,128], index: 3, kind: input, shape index: {}]
  %s4 = inlined_call_operand.vmem [shape: f32[1,128], index: 4, kind: input, shape index: {}]
  %s5 = inlined_call_operand.vmem [shape: bf16[128,64], index: 5, kind: input, shape index: {}]
  %s6 = inlined_call_operand.vmem [shape: f32[1,64], index: 6, kind: input, shape index: {}]
  %s7 = inlined_call_operand.vmem [shape: bf16[64,32], index: 7, kind: input, shape index: {}]
  %s8 = inlined_call_operand.vmem [shape: f32[1,32], index: 8, kind: input, shape index: {}]
  %s9 = inlined_call_operand.hbm [shape: f32[16,32], index: 9, kind: output, shape index: {}]
  %s10 = sld [smem:[#allocation0]]
  $region46: #{tpu_custom_call.1} parent=0
    _
  %s12 = ssub.s32 1, %s10
  %s13 = scalar_select 0, %s12, %s10
  $region1: #{tpu_custom_call.1} parent=0
    #allocation2 [shape = 'u8[8192]{0}', space=vmem, size = 0x2000, scoped, tag = 'output window, operand 0, single buffered']
    #allocation3 [shape = 's32[1]{0}', space=sflag, size = 0x4, scoped, tag = 'scoped memory for tpu_custom_call.1']
    %14 = vsyncpa [#allocation3], 0
    // Predicated region
    $region2: #{tpu_custom_call.1} parent=1 // pred_check
      _
    $region3: #{tpu_custom_call.1} parent=1 // pred_check_branch
      %16 = sbr.rel (0) target = $region5
    $region4: #{tpu_custom_call.1} parent=1 // pred_region
      _
    $region5: #{tpu_custom_call.1} parent=1 // pred_fallthru
      _
    // Predicated region
    $region6: #{tpu_custom_call.1} parent=1 // pred_check
      _
    $region7: #{tpu_custom_call.1} parent=1 // pred_check_branch
      %18 = sbr.rel (0) target = $region9
    $region8: #{tpu_custom_call.1} parent=1 // pred_region
      _
    $region9: #{tpu_custom_call.1} parent=1 // pred_fallthru
      _
    // Predicated region
    $region10: #{tpu_custom_call.1} parent=1 // pred_check
      _
    $region11: #{tpu_custom_call.1} parent=1 // pred_check_branch
      %20 = sbr.rel (0) target = $region13
    $region12: #{tpu_custom_call.1} parent=1 // pred_region
      _
    $region13: #{tpu_custom_call.1} parent=1 // pred_fallthru
      _
    // Predicated region
    $region14: #{tpu_custom_call.1} parent=1 // pred_check
      _
    $region15: #{tpu_custom_call.1} parent=1 // pred_check_branch
      %22 = sbr.rel (0) target = $region17
    $region16: #{tpu_custom_call.1} parent=1 // pred_region
      _
    $region17: #{tpu_custom_call.1} parent=1 // pred_fallthru
      _
    // Predicated region
    $region18: #{tpu_custom_call.1} parent=1 // pred_check
      _
    $region19: #{tpu_custom_call.1} parent=1 // pred_check_branch
      %24 = sbr.rel (0) target = $region21
    $region20: #{tpu_custom_call.1} parent=1 // pred_region
      _
    $region21: #{tpu_custom_call.1} parent=1 // pred_fallthru
      _
    // Predicated region
    $region22: #{tpu_custom_call.1} parent=1 // pred_check
      _
    $region23: #{tpu_custom_call.1} parent=1 // pred_check_branch
      %26 = sbr.rel (0) target = $region25
    $region24: #{tpu_custom_call.1} parent=1 // pred_region
      _
    $region25: #{tpu_custom_call.1} parent=1 // pred_fallthru
      _
    // Predicated region
    $region26: #{tpu_custom_call.1} parent=1 // pred_check
      _
    $region27: #{tpu_custom_call.1} parent=1 // pred_check_branch
      %28 = sbr.rel (0) target = $region29
    $region28: #{tpu_custom_call.1} parent=1 // pred_region
      _
    $region29: #{tpu_custom_call.1} parent=1 // pred_fallthru
      _
    // Predicated region
    $region30: #{tpu_custom_call.1} parent=1 // pred_check
      _
    $region31: #{tpu_custom_call.1} parent=1 // pred_check_branch
      %30 = sbr.rel (0) target = $region33
    $region32: #{tpu_custom_call.1} parent=1 // pred_region
      _
    $region33: #{tpu_custom_call.1} parent=1 // pred_fallthru
      _
    // Predicated region
    $region34: #{tpu_custom_call.1} parent=1 // pred_check
      _
    $region35: #{tpu_custom_call.1} parent=1 // pred_check_branch
      %32 = sbr.rel (0) target = $region37
    $region36: #{tpu_custom_call.1} parent=1 // pred_region
      _
    $region37: #{tpu_custom_call.1} parent=1 // pred_fallthru
      _
    %v34 = vld [vmem:[%s0] sm:$0xf]
    %v35 = vld [vmem:[%s0 + $0x4] sm:$0xf]
    %v36 = vld [vmem:[%s1] sm:$0xf]
    %v37 = vld [vmem:[%s1 + $0x4] sm:$0xf]
    %v38 = vld [vmem:[%s1 + $0x8] sm:$0xf]
    %v39 = vld [vmem:[%s1 + $0xc] sm:$0xf]
    %v40 = vld [vmem:[%s2] sm:$0x1]
    %v42 = vlaneseq
    %v43 = vshrl.u32 %v42, 7
    %v44 = vsub.s32 0, %v43
    %v45 = vrot.slane %v40, %v44
    %v49 = vunpack.c.l.b16 %v34
    %v50 = vunpack.c.l.b16 %v35
    %v51 = vpack.c.b16 %v50, %v49
    %v56 = vunpack.c.l.b16 %v36
    %v57 = vunpack.c.l.b16 %v37
    %v58 = vunpack.c.l.b16 %v38
    %v59 = vunpack.c.l.b16 %v39
    %v60 = vpack.c.b16 %v57, %v56
    %v61 = vpack.c.b16 %v59, %v58
    %vm64 = vcmask 261120
    %v66 = vsel %vm64, %v51, 0
    %68 = vmatprep.subr.bf16.mxu0 0
    %69 = vmatpush1.bf16.msra.mxu0 %v60
    %70 = vmatprep.subr.bf16.mxu0 0
    %71 = vmatpush1.bf16.msra.mxu0 %v61
    %72 = vmatprep.subr.bf16.mxu0 0
    %73 = vmatpush1.bf16.msra.mxu0 0
    %74 = vmatprep.subr.bf16.mxu0 0
    %75 = vmatpush1.bf16.msra.mxu0 0
    %76 = vmatprep.subr.bf16.mxu0 0
    %77 = vmatpush1.bf16.msra.mxu0 0
    %78 = vmatprep.subr.bf16.mxu0 0
    %79 = vmatpush1.bf16.msra.mxu0 0
    %80 = vmatprep.subr.bf16.mxu0 0
    %81 = vmatpush1.bf16.msra.mxu0 0
    %82 = vmatprep.subr.bf16.mxu0 0
    %83 = vmatpush1.bf16.msra.mxu0 0
    %84 = vmatprep.subr.bf16.mxu0 0
    %85 = vmatpush1.bf16.msra.mxu0 0
    %86 = vmatprep.subr.bf16.mxu0 0
    %87 = vmatpush1.bf16.msra.mxu0 0
    %88 = vmatprep.subr.bf16.mxu0 0
    %89 = vmatpush1.bf16.msra.mxu0 0
    %90 = vmatprep.subr.bf16.mxu0 0
    %91 = vmatpush1.bf16.msra.mxu0 0
    %92 = vmatprep.subr.bf16.mxu0 0
    %93 = vmatpush1.bf16.msra.mxu0 0
    %94 = vmatprep.subr.bf16.mxu0 0
    %95 = vmatpush1.bf16.msra.mxu0 0
    %96 = vmatprep.subr.bf16.mxu0 0
    %97 = vmatpush1.bf16.msra.mxu0 0
    %98 = vmatprep.subr.bf16.mxu0 0
    %99 = vmatpush1.bf16.msra.mxu0 0
    %100 = vmatprep.mubr.bf16.mxu0 0
    %101 = vmatmul.mubr.bf16.gmra.mrb[0].mxu0 %v66
    %v102 = vpop.f32.mrb[0].mxu0
    %v103 = vadd.f32 %v45, %v102
    %v104 = vpop.f32.mrb[0].mxu0
    %v105 = vpop.f32.mrb[0].mxu0
    %v106 = vadd.f32 %v45, %v105
    %v107 = vpop.f32.mrb[0].mxu0
    %108 = vdwg.mxu0
    %vm109 = vcmp.gt.f32.partialorder %v103, 0.0
    %vm110 = vcmp.gt.f32.partialorder %v106, 0.0
    %v111 = vmul.f32 %v103, 0.2
    %v112 = vmul.f32 %v106, 0.2
    %v113 = vsel %vm109, %v103, %v111
    %v114 = vsel %vm110, %v106, %v112
    %v115 = vpack.c.bf16 %v114, %v113
    %v116 = vld [vmem:[%s3] sm:$0xf]
    %v117 = vld [vmem:[%s3 + $0x4] sm:$0xf]
    %v118 = vld [vmem:[%s3 + $0x8] sm:$0xf]
    %v119 = vld [vmem:[%s3 + $0xc] sm:$0xf]
    %v120 = vld [vmem:[%s3 + $0x10] sm:$0xf]
    %v121 = vld [vmem:[%s3 + $0x14] sm:$0xf]
    %v122 = vld [vmem:[%s3 + $0x18] sm:$0xf]
    %v123 = vld [vmem:[%s3 + $0x1c] sm:$0xf]
    %v124 = vld [vmem:[%s4] sm:$0x1]
    %v126 = vlaneseq
    %v127 = vshrl.u32 %v126, 7
    %v128 = vsub.s32 0, %v127
    %v129 = vrot.slane %v124, %v128
    %v139 = vunpack.c.l.b16 %v116
    %v140 = vunpack.c.l.b16 %v117
    %v141 = vunpack.c.l.b16 %v118
    %v142 = vunpack.c.l.b16 %v119
    %v143 = vunpack.c.l.b16 %v120
    %v144 = vunpack.c.l.b16 %v121
    %v145 = vunpack.c.l.b16 %v122
    %v146 = vunpack.c.l.b16 %v123
    %v147 = vpack.c.b16 %v140, %v139
    %v148 = vpack.c.b16 %v142, %v141
    %v149 = vpack.c.b16 %v144, %v143
    %v150 = vpack.c.b16 %v146, %v145
    %vm155 = vcmask 523264
    %v157 = vsel %vm155, %v115, 0
    %159 = vmatprep.subr.bf16.mxu0 0
    %160 = vmatpush1.bf16.msra.mxu0 %v147
    %161 = vmatprep.subr.bf16.mxu0 0
    %162 = vmatpush1.bf16.msra.mxu0 %v148
    %163 = vmatprep.subr.bf16.mxu0 0
    %164 = vmatpush1.bf16.msra.mxu0 %v149
    %165 = vmatprep.subr.bf16.mxu0 0
    %166 = vmatpush1.bf16.msra.mxu0 %v150
    %167 = vmatprep.subr.bf16.mxu0 0
    %168 = vmatpush1.bf16.msra.mxu0 0
    %169 = vmatprep.subr.bf16.mxu0 0
    %170 = vmatpush1.bf16.msra.mxu0 0
    %171 = vmatprep.subr.bf16.mxu0 0
    %172 = vmatpush1.bf16.msra.mxu0 0
    %173 = vmatprep.subr.bf16.mxu0 0
    %174 = vmatpush1.bf16.msra.mxu0 0
    %175 = vmatprep.subr.bf16.mxu0 0
    %176 = vmatpush1.bf16.msra.mxu0 0
    %177 = vmatprep.subr.bf16.mxu0 0
    %178 = vmatpush1.bf16.msra.mxu0 0
    %179 = vmatprep.subr.bf16.mxu0 0
    %180 = vmatpush1.bf16.msra.mxu0 0
    %181 = vmatprep.subr.bf16.mxu0 0
    %182 = vmatpush1.bf16.msra.mxu0 0
    %183 = vmatprep.subr.bf16.mxu0 0
    %184 = vmatpush1.bf16.msra.mxu0 0
    %185 = vmatprep.subr.bf16.mxu0 0
    %186 = vmatpush1.bf16.msra.mxu0 0
    %187 = vmatprep.subr.bf16.mxu0 0
    %188 = vmatpush1.bf16.msra.mxu0 0
    %189 = vmatprep.subr.bf16.mxu0 0
    %190 = vmatpush1.bf16.msra.mxu0 0
    %191 = vmatprep.mubr.bf16.mxu0 0
    %192 = vmatmul.mubr.bf16.gmra.mrb[0].mxu0 %v157
    %v193 = vpop.f32.mrb[0].mxu0
    %v194 = vadd.f32 %v129, %v193
    %v195 = vpop.f32.mrb[0].mxu0
    %v196 = vpop.f32.mrb[0].mxu0
    %v197 = vadd.f32 %v129, %v196
    %v198 = vpop.f32.mrb[0].mxu0
    %199 = vdwg.mxu0
    %vm200 = vcmp.gt.f32.partialorder %v194, 0.0
    %vm201 = vcmp.gt.f32.partialorder %v197, 0.0
    %v202 = vmul.f32 %v194, 0.2
    %v203 = vmul.f32 %v197, 0.2
    %v204 = vsel %vm200, %v194, %v202
    %v205 = vsel %vm201, %v197, %v203
    %v206 = vpack.c.bf16 %v205, %v204
    %v207 = vld [vmem:[%s5] sm:$0xf]
    %v208 = vld [vmem:[%s5 + $0x4] sm:$0xf]
    %v209 = vld [vmem:[%s5 + $0x8] sm:$0xf]
    %v210 = vld [vmem:[%s5 + $0xc] sm:$0xf]
    %v211 = vld [vmem:[%s5 + $0x10] sm:$0xf]
    %v212 = vld [vmem:[%s5 + $0x14] sm:$0xf]
    %v213 = vld [vmem:[%s5 + $0x18] sm:$0xf]
    %v214 = vld [vmem:[%s5 + $0x1c] sm:$0xf]
    %v215 = vld [vmem:[%s5 + $0x20] sm:$0xf]
    %v216 = vld [vmem:[%s5 + $0x24] sm:$0xf]
    %v217 = vld [vmem:[%s5 + $0x28] sm:$0xf]
    %v218 = vld [vmem:[%s5 + $0x2c] sm:$0xf]
    %v219 = vld [vmem:[%s5 + $0x30] sm:$0xf]
    %v220 = vld [vmem:[%s5 + $0x34] sm:$0xf]
    %v221 = vld [vmem:[%s5 + $0x38] sm:$0xf]
    %v222 = vld [vmem:[%s5 + $0x3c] sm:$0xf]
    %v223 = vld [vmem:[%s6] sm:$0x1]
    %v225 = vlaneseq
    %v226 = vshrl.u32 %v225, 7
    %v227 = vsub.s32 0, %v226
    %v228 = vrot.slane %v223, %v227
    %v246 = vunpack.c.l.b16 %v207
    %v247 = vunpack.c.l.b16 %v208
    %v248 = vunpack.c.l.b16 %v209
    %v249 = vunpack.c.l.b16 %v210
    %v250 = vunpack.c.l.b16 %v211
    %v251 = vunpack.c.l.b16 %v212
    %v252 = vunpack.c.l.b16 %v213
    %v253 = vunpack.c.l.b16 %v214
    %v254 = vunpack.c.l.b16 %v215
    %v255 = vunpack.c.l.b16 %v216
    %v256 = vunpack.c.l.b16 %v217
    %v257 = vunpack.c.l.b16 %v218
    %v258 = vunpack.c.l.b16 %v219
    %v259 = vunpack.c.l.b16 %v220
    %v260 = vunpack.c.l.b16 %v221
    %v261 = vunpack.c.l.b16 %v222
    %v262 = vpack.c.b16 %v247, %v246
    %v263 = vpack.c.b16 %v249, %v248
    %v264 = vpack.c.b16 %v251, %v250
    %v265 = vpack.c.b16 %v253, %v252
    %v266 = vpack.c.b16 %v255, %v254
    %v267 = vpack.c.b16 %v257, %v256
    %v268 = vpack.c.b16 %v259, %v258
    %v269 = vpack.c.b16 %v261, %v260
    %278 = vmatprep.subr.bf16.mxu0 0
    %279 = vmatpush1.bf16.msra.mxu0 %v262
    %280 = vmatprep.subr.bf16.mxu0 0
    %281 = vmatpush1.bf16.msra.mxu0 %v263
    %282 = vmatprep.subr.bf16.mxu0 0
    %283 = vmatpush1.bf16.msra.mxu0 %v264
    %284 = vmatprep.subr.bf16.mxu0 0
    %285 = vmatpush1.bf16.msra.mxu0 %v265
    %286 = vmatprep.subr.bf16.mxu0 0
    %287 = vmatpush1.bf16.msra.mxu0 %v266
    %288 = vmatprep.subr.bf16.mxu0 0
    %289 = vmatpush1.bf16.msra.mxu0 %v267
    %290 = vmatprep.subr.bf16.mxu0 0
    %291 = vmatpush1.bf16.msra.mxu0 %v268
    %292 = vmatprep.subr.bf16.mxu0 0
    %293 = vmatpush1.bf16.msra.mxu0 %v269
    %294 = vmatprep.subr.bf16.mxu0 0
    %295 = vmatpush1.bf16.msra.mxu0 0
    %296 = vmatprep.subr.bf16.mxu0 0
    %297 = vmatpush1.bf16.msra.mxu0 0
    %298 = vmatprep.subr.bf16.mxu0 0
    %299 = vmatpush1.bf16.msra.mxu0 0
    %300 = vmatprep.subr.bf16.mxu0 0
    %301 = vmatpush1.bf16.msra.mxu0 0
    %302 = vmatprep.subr.bf16.mxu0 0
    %303 = vmatpush1.bf16.msra.mxu0 0
    %304 = vmatprep.subr.bf16.mxu0 0
    %305 = vmatpush1.bf16.msra.mxu0 0
    %306 = vmatprep.subr.bf16.mxu0 0
    %307 = vmatpush1.bf16.msra.mxu0 0
    %308 = vmatprep.subr.bf16.mxu0 0
    %309 = vmatpush1.bf16.msra.mxu0 0
    %310 = vmatprep.mubr.bf16.mxu0 0
    %311 = vmatmul.mubr.bf16.gmra.mrb[0].mxu0 %v206
    %v312 = vpop.f32.mrb[0].mxu0
    %v313 = vadd.f32 %v228, %v312
    %v314 = vpop.f32.mrb[0].mxu0
    %v315 = vpop.f32.mrb[0].mxu0
    %v316 = vadd.f32 %v228, %v315
    %v317 = vpop.f32.mrb[0].mxu0
    %318 = vdwg.mxu0
    %vm319 = vcmp.gt.f32.partialorder %v313, 0.0
    %vm320 = vcmp.gt.f32.partialorder %v316, 0.0
    %v321 = vmul.f32 %v313, 0.2
    %v322 = vmul.f32 %v316, 0.2
    %v323 = vsel %vm319, %v313, %v321
    %v324 = vsel %vm320, %v316, %v322
    %v325 = vpack.c.bf16 %v324, %v323
    %v326 = vld [vmem:[%s7] sm:$0xf]
    %v327 = vld [vmem:[%s7 + $0x4] sm:$0xf]
    %v328 = vld [vmem:[%s7 + $0x8] sm:$0xf]
    %v329 = vld [vmem:[%s7 + $0xc] sm:$0xf]
    %v330 = vld [vmem:[%s7 + $0x10] sm:$0xf]
    %v331 = vld [vmem:[%s7 + $0x14] sm:$0xf]
    %v332 = vld [vmem:[%s7 + $0x18] sm:$0xf]
    %v333 = vld [vmem:[%s7 + $0x1c] sm:$0xf]
    %v334 = vld [vmem:[%s8] sm:$0x1]
    %v336 = vlaneseq
    %v337 = vshrl.u32 %v336, 7
    %v338 = vsub.s32 0, %v337
    %v339 = vrot.slane %v334, %v338
    %v349 = vunpack.c.l.b16 %v326
    %v350 = vunpack.c.l.b16 %v327
    %v351 = vunpack.c.l.b16 %v328
    %v352 = vunpack.c.l.b16 %v329
    %v353 = vunpack.c.l.b16 %v330
    %v354 = vunpack.c.l.b16 %v331
    %v355 = vunpack.c.l.b16 %v332
    %v356 = vunpack.c.l.b16 %v333
    %v357 = vpack.c.b16 %v350, %v349
    %v358 = vpack.c.b16 %v352, %v351
    %v359 = vpack.c.b16 %v354, %v353
    %v360 = vpack.c.b16 %v356, %v355
    %v366 = vsel %vm155, %v325, 0
    %368 = vmatprep.subr.bf16.mxu0 0
    %369 = vmatpush1.bf16.msra.mxu0 %v357
    %370 = vmatprep.subr.bf16.mxu0 0
    %371 = vmatpush1.bf16.msra.mxu0 %v358
    %372 = vmatprep.subr.bf16.mxu0 0
    %373 = vmatpush1.bf16.msra.mxu0 %v359
    %374 = vmatprep.subr.bf16.mxu0 0
    %375 = vmatpush1.bf16.msra.mxu0 %v360
    %376 = vmatprep.subr.bf16.mxu0 0
    %377 = vmatpush1.bf16.msra.mxu0 0
    %378 = vmatprep.subr.bf16.mxu0 0
    %379 = vmatpush1.bf16.msra.mxu0 0
    %380 = vmatprep.subr.bf16.mxu0 0
    %381 = vmatpush1.bf16.msra.mxu0 0
    %382 = vmatprep.subr.bf16.mxu0 0
    %383 = vmatpush1.bf16.msra.mxu0 0
    %384 = vmatprep.subr.bf16.mxu0 0
    %385 = vmatpush1.bf16.msra.mxu0 0
    %386 = vmatprep.subr.bf16.mxu0 0
    %387 = vmatpush1.bf16.msra.mxu0 0
    %388 = vmatprep.subr.bf16.mxu0 0
    %389 = vmatpush1.bf16.msra.mxu0 0
    %390 = vmatprep.subr.bf16.mxu0 0
    %391 = vmatpush1.bf16.msra.mxu0 0
    %392 = vmatprep.subr.bf16.mxu0 0
    %393 = vmatpush1.bf16.msra.mxu0 0
    %394 = vmatprep.subr.bf16.mxu0 0
    %395 = vmatpush1.bf16.msra.mxu0 0
    %396 = vmatprep.subr.bf16.mxu0 0
    %397 = vmatpush1.bf16.msra.mxu0 0
    %398 = vmatprep.subr.bf16.mxu0 0
    %399 = vmatpush1.bf16.msra.mxu0 0
    %400 = vmatprep.mubr.bf16.mxu0 0
    %401 = vmatmul.mubr.bf16.gmra.mrb[0].mxu0 %v366
    %v402 = vpop.f32.mrb[0].mxu0
    %v403 = vadd.f32 %v339, %v402
    %v404 = vpop.f32.mrb[0].mxu0
    %v405 = vpop.f32.mrb[0].mxu0
    %v406 = vadd.f32 %v339, %v405
    %v407 = vpop.f32.mrb[0].mxu0
    %408 = vdwg.mxu0
    %v409 = vtanh.pop %v403
    %v410 = vtanh.pop %v406
    %411 = vst.msk [vmem:[#allocation2] sm:$0xff] %vm64, %v409
    %412 = vst.msk [vmem:[#allocation2 + $0x8] sm:$0xff] %vm64, %v410
    // Predicated region
    $region38: #{tpu_custom_call.1} parent=1 // pred_check
      _
    $region39: #{tpu_custom_call.1} parent=1 // pred_check_branch
      %414 = sbr.rel (0) target = $region41
    $region40: #{tpu_custom_call.1} parent=1 // pred_region
      %s416 = ssub.s32 256, 256
      %417 = vsyncadd [#allocation3], %s416
      %s418 = sshll.u32 [#allocation2], 4
      %s419 = int_to_ptr.vmem [resolvable:$true] %s418
      %424 = dma.vmem_to_hbm [thread:$0]  %s419, 256, %s9, [#allocation3], 128, 128, 8
    $region41: #{tpu_custom_call.1} parent=1 // pred_fallthru
      _
    // Predicated region
    $region42: #{tpu_custom_call.1} parent=1 // pred_check
      _
    $region43: #{tpu_custom_call.1} parent=1 // pred_check_branch
      %426 = sbr.rel (0) target = $region45
    $region44: #{tpu_custom_call.1} parent=1 // pred_region
      %427 = dma.done [#allocation3], 256
    $region45: #{tpu_custom_call.1} parent=1 // pred_fallthru
      _
    %428 = vsyncpa [#allocation3], 1

</llo_original>
